<compile_context>
chip_gen: v6e
topology: v6e:2x2x1
jax: 0.10.0
libtpu: 0.0.40
codegen_flags: <defaults>
</compile_context>

<pallas_src>
import functools

import jax
import jax.numpy as jnp
from jax.experimental import pallas as pl
from jax.experimental.pallas import tpu as pltpu


def _sublane_multiple(dtype) -> int:
    """Native sublane packing for the dtype (f32:8, bf16/f16:16, int8/fp8:32)."""
    itemsize = jnp.dtype(dtype).itemsize
    if itemsize == 2:
        return 16
    if itemsize == 1:
        return 32
    return 8


def _round_up(v, m):
    return ((v + m - 1) // m) * m


def _cat_add_kernel(x_ref, y_ref, o_ref, *, tail_local, nb_x):
    i = pl.program_id(0)  # row-block index

    # Hot path: one wide, unmasked (tm, td) store of x + 2*y (row-broadcast,
    # pure VPU).  Gated so the tail-only extra step (when M % tm == 0) skips
    # the wasted full-block compute / mostly-masked writeback.
    @pl.when(i < nb_x)
    def _():
        o_ref[...] = x_ref[...] + 2.0 * y_ref[...]

    # The concatenated y row (global row M): y + 2*y = 3*y.  Written only on
    # the last row-block so the hot loop's store path stays lane/sublane-dense.
    @pl.when(i == pl.num_programs(0) - 1)
    def _():
        o_ref[tail_local:tail_local + 1, :] = 3.0 * y_ref[...]


def cat_add(x, y, *, tm=None, td=None, target_bytes=4 << 20,
            min_pallas_bytes=8 << 20, vmem_limit_bytes=32 << 20):
    """Fused `w = concat([x, y], 0) + 2*y` with x:(M, D), y:(1, D)."""
    M, D = x.shape
    My, Dy = y.shape
    assert Dy == D and My == 1, "y must be a single (1, D) row"
    out_dtype = x.dtype
    itemsize = jnp.dtype(out_dtype).itemsize

    # Tiny problems (and the degenerate M == 0 case): pallas_call launch /
    # custom-call boundary overhead dominates the HBM traffic -> let XLA fuse
    # the plain ops instead.
    if M == 0 or (M + 1) * D * itemsize < min_pallas_bytes:
        return jnp.concatenate([x, y], axis=0) + 2.0 * y

    sublane = _sublane_multiple(out_dtype)

    # ---- tile selection ----------------------------------------------------
    # Lane (D) tiling: keep the full row unless even a minimum-height block
    # exceeds the per-block byte budget; otherwise tile D in 128-lane chunks.
    if td is None:
        if sublane * D * itemsize <= target_bytes:
            td = D
        else:
            td = max(128, (target_bytes // (sublane * itemsize)) // 128 * 128)
            td = min(td, D)
    # Sublane (row) tiling: fill the remaining budget, dtype-aware rounding.
    if tm is None:
        tm = target_bytes // max(1, td * itemsize)
    tm = min(int(tm), _round_up(M + 1, sublane))  # don't over-allocate small M
    tm = max(sublane, (tm // sublane) * sublane)

    nd = pl.cdiv(D, td)
    nb_out = pl.cdiv(M + 1, tm)           # grid covers all M+1 output rows
    nb_x = pl.cdiv(M, tm)                 # valid row-block range for x
    tail_local = M - (nb_out - 1) * tm    # row M's offset inside last block

    kernel = functools.partial(_cat_add_kernel,
                               tail_local=tail_local, nb_x=nb_x)

    return pl.pallas_call(
        kernel,
        out_shape=jax.ShapeDtypeStruct((M + 1, D), out_dtype),
        grid_spec=pltpu.PrefetchScalarGridSpec(
            num_scalar_prefetch=0,
            grid=(nb_out, nd),
            in_specs=[
                # Clamp so a tail-only extra row-block never indexes past x's
                # last row block (that fetch is unused; the body is gated off).
                pl.BlockSpec((tm, td),
                             lambda i, j: (jnp.minimum(i, nb_x - 1), j)),
                # Single y row: tiny, re-fetched only per column block.
                pl.BlockSpec((1, td), lambda i, j: (0, j)),
            ],
            out_specs=pl.BlockSpec((tm, td), lambda i, j: (i, j)),
        ),
        compiler_params=pltpu.CompilerParams(
            # Every (row, col) output block is independent -> megacore split.
            dimension_semantics=("parallel", "parallel"),
            # Explicit limit covers 2x(x) + 2x(out) double buffering of ~4 MiB
            # blocks on every generation (v5e's scoped default is only 16 MiB,
            # v7x physical VMEM is 64 MiB so we stay well under it).
            vmem_limit_bytes=vmem_limit_bytes,
        ),
    )(x, y)


def _reference(x, y):
    return jnp.concatenate([x, y], axis=0) + 2.0 * y


if __name__ == "__main__":
    key = jax.random.PRNGKey(0)
    k = jax.random.split(key, 8)

    # 1) Module-scale (broadcast-legal analogue of the (3,1)/(3,1) example):
    #    below the byte threshold -> plain fused jnp path.
    x1 = jax.random.normal(k[0], (8, 128), dtype=jnp.float32)
    y1 = jnp.ones((1, 128), dtype=jnp.float32)
    w1 = cat_add(x1, y1)
    assert w1.shape == (9, 128)
    assert jnp.allclose(w1, _reference(x1, y1), atol=1e-6, rtol=1e-6)

    # 2) Pallas path, M % tm == tm - 1 boundary: tail row shares the last
    #    (partial) output block at local offset tm - 1.
    x2 = jax.random.normal(k[1], (255, 256), dtype=jnp.float32)
    y2 = jax.random.normal(k[2], (1, 256), dtype=jnp.float32)
    w2 = cat_add(x2, y2, tm=64, min_pallas_bytes=0)
    assert w2.shape == (256, 256)
    assert jnp.allclose(w2, _reference(x2, y2), atol=1e-6, rtol=1e-6)

    # 3) Pallas path, M % tm == 0: tail row lands in its own extra grid step,
    #    exercising the pl.when(i < nb_x) gate of the main body.
    x3 = jax.random.normal(k[3], (128, 256), dtype=jnp.float32)
    y3 = jax.random.normal(k[4], (1, 256), dtype=jnp.float32)
    w3 = cat_add(x3, y3, tm=64, min_pallas_bytes=0)
    assert w3.shape == (129, 256)
    assert jnp.allclose(w3, _reference(x3, y3), atol=1e-6, rtol=1e-6)

    # 4) Pallas path with D tiling (second grid axis over 128-lane columns).
    x4 = jax.random.normal(k[5], (40, 512), dtype=jnp.float32)
    y4 = jax.random.normal(k[6], (1, 512), dtype=jnp.float32)
    w4 = cat_add(x4, y4, tm=16, td=256, min_pallas_bytes=0)
    assert w4.shape == (41, 512)
    assert jnp.allclose(w4, _reference(x4, y4), atol=1e-6, rtol=1e-6)

    # 5) Pallas path, bf16 with automatic dtype-aware (sublane=16) tiling.
    x5 = jax.random.normal(k[7], (96, 256), dtype=jnp.float32).astype(jnp.bfloat16)
    y5 = jnp.ones((1, 256), dtype=jnp.bfloat16)
    w5 = cat_add(x5, y5, min_pallas_bytes=0)
    assert w5.shape == (97, 256)
    assert jnp.allclose(w5.astype(jnp.float32),
                        _reference(x5, y5).astype(jnp.float32),
                        atol=1e-1, rtol=1e-2)

    jax.block_until_ready((w1, w2, w3, w4, w5))
    print("KERNEL_OK")
</pallas_src>

<mosaic_0001>
module attributes {stable_mosaic.version = 11 : i64} {
  func.func @_cat_add_kernel(%arg0: i32, %arg1: i32, %arg2: memref<64x256xf32, #tpu.memory_space<vmem>>, %arg3: memref<1x256xf32, #tpu.memory_space<vmem>>, %arg4: memref<64x256xf32, #tpu.memory_space<vmem>>) attributes {dimension_semantics = [#tpu.dimension_semantics<parallel>, #tpu.dimension_semantics<parallel>], iteration_bounds = array<i64: 4, 1>, scalar_prefetch = 0 : i64, scratch_operands = 0 : i64, tpu.core_type = #tpu.core_type<tc>, window_params = [{transform_indices = @transform_0, window_bounds = array<i64: 64, 256>}, {transform_indices = @transform_1, window_bounds = array<i64: 1, 256>}, {transform_indices = @transform_2, window_bounds = array<i64: 64, 256>}]} {
    %c4_i32 = arith.constant 4 : i32
    %0 = arith.cmpi slt, %arg0, %c4_i32 : i32
    %1 = arith.extui %0 : i1 to i32
    %c0_i32 = arith.constant 0 : i32
    %2 = arith.cmpi ne, %1, %c0_i32 : i32
    scf.if %2 {
      %c0 = arith.constant 0 : index
      %c0_1 = arith.constant 0 : index
      %6 = vector.load %arg2[%c0, %c0_1] : memref<64x256xf32, #tpu.memory_space<vmem>>, vector<64x256xf32>
      %c0_2 = arith.constant 0 : index
      %c0_3 = arith.constant 0 : index
      %7 = vector.load %arg3[%c0_2, %c0_3] : memref<1x256xf32, #tpu.memory_space<vmem>>, vector<1x256xf32>
      %cst = arith.constant 2.000000e+00 : f32
      %8 = vector.broadcast %cst : f32 to vector<1x256xf32>
      %9 = arith.mulf %8, %7 : vector<1x256xf32>
      %10 = vector.broadcast %9 : vector<1x256xf32> to vector<64x256xf32>
      %11 = arith.addf %6, %10 : vector<64x256xf32>
      %c0_4 = arith.constant 0 : index
      %c0_5 = arith.constant 0 : index
      %12 = vector.load %arg4[%c0_4, %c0_5] : memref<64x256xf32, #tpu.memory_space<vmem>>, vector<64x256xf32>
      tpu.vector_store %arg4[%c0_4, %c0_5], %11 {strides = array<i32>} : memref<64x256xf32, #tpu.memory_space<vmem>>, vector<64x256xf32>,
    } else {
    }
    %c3_i32 = arith.constant 3 : i32
    %3 = arith.cmpi eq, %arg0, %c3_i32 : i32
    %4 = arith.extui %3 : i1 to i32
    %c0_i32_0 = arith.constant 0 : i32
    %5 = arith.cmpi ne, %4, %c0_i32_0 : i32
    scf.if %5 {
      %c0 = arith.constant 0 : index
      %c0_1 = arith.constant 0 : index
      %6 = vector.load %arg3[%c0, %c0_1] : memref<1x256xf32, #tpu.memory_space<vmem>>, vector<1x256xf32>
      %cst = arith.constant 3.000000e+00 : f32
      %7 = vector.broadcast %cst : f32 to vector<1x256xf32>
      %8 = arith.mulf %7, %6 : vector<1x256xf32>
      %c63 = arith.constant 63 : index
      %c0_2 = arith.constant 0 : index
      %9 = vector.load %arg4[%c63, %c0_2] : memref<64x256xf32, #tpu.memory_space<vmem>>, vector<1x256xf32>
      tpu.vector_store %arg4[%c63, %c0_2], %8 {strides = array<i32>} : memref<64x256xf32, #tpu.memory_space<vmem>>, vector<1x256xf32>,
    } else {
    }
    return
  }
  func.func @transform_0(%arg0: i32, %arg1: i32) -> (i32, i32) {
    %c3_i32 = arith.constant 3 : i32
    %0 = arith.minsi %arg0, %c3_i32 : i32
    %c0_i32 = arith.constant 0 : i32
    return %0, %arg1 : i32, i32
  }
  func.func @transform_1(%arg0: i32, %arg1: i32) -> (i32, i32) {
    %c0_i32 = arith.constant 0 : i32
    %c0_i32_0 = arith.constant 0 : i32
    return %c0_i32, %arg1 : i32, i32
  }
  func.func @transform_2(%arg0: i32, %arg1: i32) -> (i32, i32) {
    %c0_i32 = arith.constant 0 : i32
    return %arg0, %arg1 : i32, i32
  }
}

</mosaic_0001>

<llo_original>
// kernel: tpu_custom_call.1
$region0: #{tpu_custom_call.1}
  #allocation0 [shape = 'u32[]', space=smem, size = 0x4, offset = 0x4, fixed_abs, tag = 'smem constant byte address 0x4 - core index']
  #allocation1 [shape = 'u32[144,128]{1,0:T(1,128)}', space=vmem, size = 0x12000, scoped, tag = 'internal scratch']
  %s0 = inlined_call_operand.hbm [shape: f32[255,256], index: 0, kind: input, shape index: {}]
  %s1 = inlined_call_operand.hbm [shape: f32[1,256], index: 1, kind: input, shape index: {}]
  %s2 = inlined_call_operand.hbm [shape: f32[256,256], index: 2, kind: output, shape index: {}]
  %s3 = sld [smem:[#allocation0]]
  $region57: #{tpu_custom_call.1} parent=0
    _
  %s5 = ssub.s32 1, %s3
  %s6 = scalar_select 0, %s5, %s3
  $region1: #{tpu_custom_call.1} parent=0
    #allocation2 [shape = 'u8[131072]{0}', space=vmem, size = 0x20000, scoped, tag = 'input window, operand 0']
    #allocation3 [shape = 's32[2]{0}', space=sflag, size = 0x8, scoped, tag = 'scoped memory for tpu_custom_call.1']
    #allocation4 [shape = 's32[2]{0}', space=sflag, size = 0x8, scoped, tag = 'scoped memory for tpu_custom_call.1']
    #allocation5 [shape = 'u8[1024]{0}', space=vmem, size = 0x400, scoped, tag = 'input window, operand 1, single buffered']
    #allocation6 [shape = 's32[1]{0}', space=sflag, size = 0x4, scoped, tag = 'scoped memory for tpu_custom_call.1']
    #allocation7 [shape = 'u8[131072]{0}', space=vmem, size = 0x20000, scoped, tag = 'output window, operand 0']
    %7 = vsyncpa [#allocation3], 0
    %s8 = scalar_lea.sflag [#allocation3], 1
    %9 = vsyncpa %s8, 0
    %10 = vsyncpa [#allocation6], 0
    %11 = vsyncpa [#allocation4], 0
    %s12 = scalar_lea.sflag [#allocation4], 1
    %13 = vsyncpa %s12, 0
    loop: start=0, step=1, limit=6
    $region2: #{tpu_custom_call.1} parent=1 // loop_pre_header
      _
    $region3: #{tpu_custom_call.1} parent=1 // loop_header
      %s15 = sphi 0, %s19
      %p16 = scmp.ge.s32.totalorder %s15, 6
      %s22 = sphi 0, %s34
      %s23 = sphi 0, %s30
      %s24 = sphi 0, %s22
      %s25 = sphi 0, %s23
      %s26 = sphi 0, %s24
      %s27 = sphi 0, %s25
      %s43 = sphi 0, %s45
      %s46 = sphi 0, %s43
      %s47 = sphi 0, %s46
      %s63 = sphi 0, %s47
      %s69 = sphi 0, %s71
      %s72 = sphi 0, %s69
      %s73 = sphi 0, %s72
      %s89 = sphi 0, %s73
      %s97 = sphi 0, %s99
      %s100 = sphi 0, %s97
      %s101 = sphi 0, %s100
      %s117 = sphi 0, %s101
    $region4: #{tpu_custom_call.1} parent=1 // loop_header_branch
      %18 = sbr.rel (%p16) target = $region8
    $region5: #{tpu_custom_call.1} parent=1 // loop_body
      %s20 = ssub.s32 %s15, 1
      %s21 = ssub.s32 %s15, 2
      %s28 = sadd.s32 1, %s23
      %p29 = scmp.ge.s32.totalorder %s28, 1
      %s30 = scalar_select %p29, 0, %s28
      %s31 = sadd.s32 1, %s22
      %s32 = scalar_select %p29, %s31, %s22
      %p33 = scmp.ge.s32.totalorder %s32, 4
      %s34 = scalar_select %p33, 0, %s32
      %p35 = scmp.lt.s32.totalorder %s22, 3
      %s36 = scalar_select %p35, %s22, 3
      %p37 = scmp.lt.s32.totalorder %s34, 3
      %s38 = scalar_select %p37, %s34, 3
      %s39 = ssub.s32 %s36, %s38
      %s40 = ssub.s32 %s23, %s30
      %s41 = sor.u32 %s39, %s40
      %p42 = scmp.eq.s32.totalorder %s41, 0
      %s44 = sadd.s32 %s43, 1
      %s45 = scalar_select %p42, %s43, %s44
      %p48 = pneg %p42
      %p49 = scmp.eq.s32.totalorder %s15, 3
      %p50 = por %p48, %p49
      %p51 = scmp.ne.s32.totalorder %s43, %s46
      %p52 = scmp.eq.s32.totalorder %s15, 0
      %p53 = por %p51, %p52
      %p54 = scmp.ne.s32.totalorder %s43, %s46
      %p55 = scmp.eq.s32.totalorder %s20, 3
      %p56 = por %p54, %p55
      %p57 = scmp.ne.s32.totalorder %s46, %s47
      %p58 = scmp.eq.s32.totalorder %s20, 0
      %p59 = por %p57, %p58
      %p60 = scmp.ne.s32.totalorder %s46, %s47
      %p61 = scmp.eq.s32.totalorder %s21, 3
      %p62 = por %p60, %p61
      %p64 = scmp.ne.s32.totalorder %s47, %s63
      %p65 = scmp.eq.s32.totalorder %s21, 0
      %p66 = por %p64, %p65
      %s67 = ssub.s32 %s23, %s30
      %p68 = scmp.eq.s32.totalorder %s67, 0
      %s70 = sadd.s32 %s69, 1
      %s71 = scalar_select %p68, %s69, %s70
      %p74 = pneg %p68
      %p75 = scmp.eq.s32.totalorder %s15, 3
      %p76 = por %p74, %p75
      %p77 = scmp.ne.s32.totalorder %s69, %s72
      %p78 = scmp.eq.s32.totalorder %s15, 0
      %p79 = por %p77, %p78
      %p80 = scmp.ne.s32.totalorder %s69, %s72
      %p81 = scmp.eq.s32.totalorder %s20, 3
      %p82 = por %p80, %p81
      %p83 = scmp.ne.s32.totalorder %s72, %s73
      %p84 = scmp.eq.s32.totalorder %s20, 0
      %p85 = por %p83, %p84
      %p86 = scmp.ne.s32.totalorder %s72, %s73
      %p87 = scmp.eq.s32.totalorder %s21, 3
      %p88 = por %p86, %p87
      %p90 = scmp.ne.s32.totalorder %s73, %s89
      %p91 = scmp.eq.s32.totalorder %s21, 0
      %p92 = por %p90, %p91
      %s93 = ssub.s32 %s22, %s34
      %s94 = ssub.s32 %s23, %s30
      %s95 = sor.u32 %s93, %s94
      %p96 = scmp.eq.s32.totalorder %s95, 0
      %s98 = sadd.s32 %s97, 1
      %s99 = scalar_select %p96, %s97, %s98
      %p102 = pneg %p96
      %p103 = scmp.eq.s32.totalorder %s15, 3
      %p104 = por %p102, %p103
      %p105 = scmp.ne.s32.totalorder %s97, %s100
      %p106 = scmp.eq.s32.totalorder %s15, 0
      %p107 = por %p105, %p106
      %p108 = scmp.ne.s32.totalorder %s97, %s100
      %p109 = scmp.eq.s32.totalorder %s20, 3
      %p110 = por %p108, %p109
      %p111 = scmp.ne.s32.totalorder %s100, %s101
      %p112 = scmp.eq.s32.totalorder %s20, 0
      %p113 = por %p111, %p112
      %p114 = scmp.ne.s32.totalorder %s100, %s101
      %p115 = scmp.eq.s32.totalorder %s21, 3
      %p116 = por %p114, %p115
      %p118 = scmp.ne.s32.totalorder %s101, %s117
      %p119 = scmp.eq.s32.totalorder %s21, 0
      %p120 = por %p118, %p119
      %p121 = scmp.le.s32.totalorder 1, %s15
      %p122 = scmp.lt.s32.totalorder %s15, 5
      %p123 = pnand %p121, %p122
      %p124 = pneg %p123
      // Predicated region
      $region9: #{tpu_custom_call.1} parent=5 // pred_check
        _
      $region10: #{tpu_custom_call.1} parent=5 // pred_check_branch
        %126 = sbr.rel (%p123) target = $region12
      $region11: #{tpu_custom_call.1} parent=5 // pred_region
        %s127 = ssub.s32 %s15, 1
        // Predicated region
        $region13: #{tpu_custom_call.1} parent=11 // pred_check
          %p128 = pneg %p85
        $region14: #{tpu_custom_call.1} parent=11 // pred_check_branch
          %130 = sbr.rel (%p128) target = $region16
        $region15: #{tpu_custom_call.1} parent=11 // pred_region
          %s131 = smul.u32 2, %s25
          %s133 = ssub.s32 32, 32
          %134 = vsyncadd [#allocation6], %s133
          %s135 = smul.addr %s131, 16
          %s136 = scalar_lea.hbm %s1, %s135
          %s138 = sshll.u32 [#allocation5], 4
          %s139 = int_to_ptr.vmem [resolvable:$true] %s138
          %141 = dma.hbm_to_vmem [thread:$0]  %s136, 32, %s139, [#allocation6]
        $region16: #{tpu_custom_call.1} parent=11 // pred_fallthru
          _
      $region12: #{tpu_custom_call.1} parent=5 // pred_fallthru
        _
      %p142 = scmp.lt.s32.totalorder %s15, 4
      // Predicated region
      $region17: #{tpu_custom_call.1} parent=5 // pred_check
        %p143 = pneg %p142
      $region18: #{tpu_custom_call.1} parent=5 // pred_check_branch
        %145 = sbr.rel (%p143) target = $region20
      $region19: #{tpu_custom_call.1} parent=5 // pred_region
        // Predicated region
        $region21: #{tpu_custom_call.1} parent=19 // pred_check
          %p146 = pneg %p53
        $region22: #{tpu_custom_call.1} parent=19 // pred_check_branch
          %148 = sbr.rel (%p146) target = $region24
        $region23: #{tpu_custom_call.1} parent=19 // pred_region
          %s149 = sand.u32 %s43, 1
          %s150 = scalar_lea.sflag [#allocation3], %s149
          %s151 = sand.u32 %s43, 1
          %s152 = smul.addr %s151, 128
          %s153 = scalar_lea.vmem [#allocation2], %s152
          %p154 = scmp.lt.s32.totalorder %s22, 3
          %s155 = scalar_select %p154, %s22, 3
          %s156 = smul.u32 8, %s155
          %s157 = smul.u32 2, %s23
          %s159 = ssub.s32 2048, 2048
          %160 = vsyncadd %s150, %s159
          %s161 = smul.addr %s156, 2
          %s162 = sadd.s32 %s157, %s161
          %s163 = smul.addr %s162, 128
          %s164 = scalar_lea.hbm %s0, %s163
          %s165 = sshll.u32 %s153, 4
          %s166 = int_to_ptr.vmem [resolvable:$true] %s165
          %171 = dma.hbm_to_vmem [thread:$0]  %s164, 2048, %s166, %s150, 256, 256, 16
        $region24: #{tpu_custom_call.1} parent=19 // pred_fallthru
          _
      $region20: #{tpu_custom_call.1} parent=5 // pred_fallthru
        _
      %p172 = scmp.le.s32.totalorder 1, %s15
      %p173 = scmp.lt.s32.totalorder %s15, 5
      %p174 = pnand %p172, %p173
      %p175 = pneg %p174
      // Predicated region
      $region25: #{tpu_custom_call.1} parent=5 // pred_check
        _
      $region26: #{tpu_custom_call.1} parent=5 // pred_check_branch
        %177 = sbr.rel (%p174) target = $region28
      $region27: #{tpu_custom_call.1} parent=5 // pred_region
        %s178 = ssub.s32 %s15, 1
        %s179 = sand.u32 %s46, 1
        %s180 = scalar_lea.sflag [#allocation3], %s179
        %s181 = sand.u32 %s46, 1
        %s182 = smul.addr %s181, 128
        %s183 = scalar_lea.vmem [#allocation2], %s182
        // Predicated region
        $region29: #{tpu_custom_call.1} parent=27 // pred_check
          %p184 = pneg %p59
        $region30: #{tpu_custom_call.1} parent=27 // pred_check_branch
          %186 = sbr.rel (%p184) target = $region32
        $region31: #{tpu_custom_call.1} parent=27 // pred_region
          %187 = dma.done %s180, 2048
        $region32: #{tpu_custom_call.1} parent=27 // pred_fallthru
          _
        // Predicated region
        $region33: #{tpu_custom_call.1} parent=27 // pred_check
          %p188 = pneg %p85
        $region34: #{tpu_custom_call.1} parent=27 // pred_check_branch
          %190 = sbr.rel (%p188) target = $region36
        $region35: #{tpu_custom_call.1} parent=27 // pred_region
          %191 = dma.done [#allocation6], 32
        $region36: #{tpu_custom_call.1} parent=27 // pred_fallthru
          _
        %s192 = sand.u32 %s46, 1
        %s193 = scalar_lea.sflag [#allocation3], %s192
        %s194 = sand.u32 %s46, 1
        %s195 = smul.addr %s194, 128
        %s196 = scalar_lea.vmem [#allocation2], %s195
        %p197 = pneg %p59
        %p198 = pneg %p56
        %p199 = pneg %p85
        %p200 = pneg %p82
        %p201 = pneg %p113
        %p202 = pneg %p110
        %s203 = sand.u32 %s100, 1
        %s204 = scalar_lea.sflag [#allocation4], %s203
        %s205 = sand.u32 %s100, 1
        %s206 = smul.addr %s205, 128
        %s207 = scalar_lea.vmem [#allocation7], %s206
        %p208 = scmp.lt.s32.totalorder %s24, 3
        %s209 = scalar_select %p208, %s24, 3
        %s210 = smul.u32 8, %s209
        %s211 = smul.u32 2, %s25
        %s212 = smul.u32 2, %s25
        %s213 = smul.u32 8, %s24
        %s214 = smul.u32 2, %s25
        %p215 = scmp.lt.s32.totalorder %s24, 4
        // Predicated region
        $region37: #{tpu_custom_call.1} parent=27 // pred_check
          %p216 = pneg %p215
        $region38: #{tpu_custom_call.1} parent=27 // pred_check_branch
          %218 = sbr.rel (%p216) target = $region40
        $region39: #{tpu_custom_call.1} parent=27 // pred_region
          %v219 = vld [vmem:[%s183] sm:$0xff]
          %v220 = vld [vmem:[%s183 + $0x8] sm:$0xff]
          %v221 = vld [vmem:[%s183 + $0x10] sm:$0xff]
          %v222 = vld [vmem:[%s183 + $0x18] sm:$0xff]
          %v223 = vld [vmem:[%s183 + $0x20] sm:$0xff]
          %v224 = vld [vmem:[%s183 + $0x28] sm:$0xff]
          %v225 = vld [vmem:[%s183 + $0x30] sm:$0xff]
          %v226 = vld [vmem:[%s183 + $0x38] sm:$0xff]
          %v227 = vld [vmem:[%s183 + $0x40] sm:$0xff]
          %v228 = vld [vmem:[%s183 + $0x48] sm:$0xff]
          %v229 = vld [vmem:[%s183 + $0x50] sm:$0xff]
          %v230 = vld [vmem:[%s183 + $0x58] sm:$0xff]
          %v231 = vld [vmem:[%s183 + $0x60] sm:$0xff]
          %v232 = vld [vmem:[%s183 + $0x68] sm:$0xff]
          %v233 = vld [vmem:[%s183 + $0x70] sm:$0xff]
          %v234 = vld [vmem:[%s183 + $0x78] sm:$0xff]
          %v235 = vld [vmem:[#allocation5] sm:$0x3]
          %v236 = vmul.f32 %v235, 2.0
          %v238 = vlaneseq
          %v239 = vshrl.u32 %v238, 7
          %v240 = vsub.s32 0, %v239
          %v241 = vrot.slane %v236, %v240
          %v242 = vlaneseq
          %v243 = vshrl.u32 %v242, 7
          %v244 = vsub.s32 1, %v243
          %v245 = vrot.slane %v236, %v244
          %v248 = vadd.f32 %v219, %v241
          %v249 = vadd.f32 %v220, %v245
          %v250 = vadd.f32 %v221, %v241
          %v251 = vadd.f32 %v222, %v245
          %v252 = vadd.f32 %v223, %v241
          %v253 = vadd.f32 %v224, %v245
          %v254 = vadd.f32 %v225, %v241
          %v255 = vadd.f32 %v226, %v245
          %v256 = vadd.f32 %v227, %v241
          %v257 = vadd.f32 %v228, %v245
          %v258 = vadd.f32 %v229, %v241
          %v259 = vadd.f32 %v230, %v245
          %v260 = vadd.f32 %v231, %v241
          %v261 = vadd.f32 %v232, %v245
          %v262 = vadd.f32 %v233, %v241
          %v263 = vadd.f32 %v234, %v245
          %264 = vst [vmem:[%s207] sm:$0xff] %v248
          %265 = vst [vmem:[%s207 + $0x8] sm:$0xff] %v249
          %266 = vst [vmem:[%s207 + $0x10] sm:$0xff] %v250
          %267 = vst [vmem:[%s207 + $0x18] sm:$0xff] %v251
          %268 = vst [vmem:[%s207 + $0x20] sm:$0xff] %v252
          %269 = vst [vmem:[%s207 + $0x28] sm:$0xff] %v253
          %270 = vst [vmem:[%s207 + $0x30] sm:$0xff] %v254
          %271 = vst [vmem:[%s207 + $0x38] sm:$0xff] %v255
          %272 = vst [vmem:[%s207 + $0x40] sm:$0xff] %v256
          %273 = vst [vmem:[%s207 + $0x48] sm:$0xff] %v257
          %274 = vst [vmem:[%s207 + $0x50] sm:$0xff] %v258
          %275 = vst [vmem:[%s207 + $0x58] sm:$0xff] %v259
          %276 = vst [vmem:[%s207 + $0x60] sm:$0xff] %v260
          %277 = vst [vmem:[%s207 + $0x68] sm:$0xff] %v261
          %278 = vst [vmem:[%s207 + $0x70] sm:$0xff] %v262
          %279 = vst [vmem:[%s207 + $0x78] sm:$0xff] %v263
        $region40: #{tpu_custom_call.1} parent=27 // pred_fallthru
          _
        %p280 = scmp.eq.s32.totalorder %s24, 3
        // Predicated region
        $region41: #{tpu_custom_call.1} parent=27 // pred_check
          %p281 = pneg %p280
        $region42: #{tpu_custom_call.1} parent=27 // pred_check_branch
          %283 = sbr.rel (%p281) target = $region44
        $region43: #{tpu_custom_call.1} parent=27 // pred_region
          %v284 = vld [vmem:[#allocation5] sm:$0x3]
          %v285 = vmul.f32 %v284, 3.0
          %v286 = vlaneseq
          %vm287 = vcmp.ge.s32.totalorder %v286, 0
          %vm288 = vcmp.lt.s32.totalorder %v286, 256
          %vm289 = vmand %vm287, %vm288
          %s290 = scalar_lea.vmem %s207, 119 [#allocation7]
          %291 = vst.msk [vmem:[%s290] ss:$8 sm:$0x3] %vm289, %v285
          %292 = vst.msk [vmem:[%s290] ss:$8 sm:$0x0] %vm289, %v285
        $region44: #{tpu_custom_call.1} parent=27 // pred_fallthru
          _
        %s293 = sand.u32 %s100, 1
        %s294 = scalar_lea.sflag [#allocation4], %s293
        %s295 = sand.u32 %s100, 1
        %s296 = smul.addr %s295, 128
        %s297 = scalar_lea.vmem [#allocation7], %s296
        // Predicated region
        $region45: #{tpu_custom_call.1} parent=27 // pred_check
          %p298 = pneg %p110
        $region46: #{tpu_custom_call.1} parent=27 // pred_check_branch
          %300 = sbr.rel (%p298) target = $region48
        $region47: #{tpu_custom_call.1} parent=27 // pred_region
          %s301 = smul.u32 8, %s24
          %s302 = smul.u32 2, %s25
          %s304 = ssub.s32 2048, 2048
          %305 = vsyncadd %s294, %s304
          %s306 = smul.addr %s301, 2
          %s307 = sadd.s32 %s302, %s306
          %s308 = smul.addr %s307, 128
          %s309 = scalar_lea.hbm %s2, %s308
          %s310 = sshll.u32 %s297, 4
          %s311 = int_to_ptr.vmem [resolvable:$true] %s310
          %316 = dma.vmem_to_hbm [thread:$0]  %s311, 2048, %s309, %s294, 256, 256, 16
        $region48: #{tpu_custom_call.1} parent=27 // pred_fallthru
          _
      $region28: #{tpu_custom_call.1} parent=5 // pred_fallthru
        _
      %p317 = scmp.le.s32.totalorder 2, %s15
      // Predicated region
      $region49: #{tpu_custom_call.1} parent=5 // pred_check
        %p318 = pneg %p317
      $region50: #{tpu_custom_call.1} parent=5 // pred_check_branch
        %320 = sbr.rel (%p318) target = $region52
      $region51: #{tpu_custom_call.1} parent=5 // pred_region
        %s321 = ssub.s32 %s15, 2
        // Predicated region
        $region53: #{tpu_custom_call.1} parent=51 // pred_check
          %p322 = pneg %p116
        $region54: #{tpu_custom_call.1} parent=51 // pred_check_branch
          %324 = sbr.rel (%p322) target = $region56
        $region55: #{tpu_custom_call.1} parent=51 // pred_region
          %s325 = sand.u32 %s101, 1
          %s326 = scalar_lea.sflag [#allocation4], %s325
          %s327 = sand.u32 %s101, 1
          %s328 = smul.addr %s327, 128
          %s329 = scalar_lea.vmem [#allocation7], %s328
          %330 = dma.done %s326, 2048
        $region56: #{tpu_custom_call.1} parent=51 // pred_fallthru
          _
      $region52: #{tpu_custom_call.1} parent=5 // pred_fallthru
        _
    $region6: #{tpu_custom_call.1} parent=1 // loop_footer
      %s19 = sadd.s32 1, %s15
    $region7: #{tpu_custom_call.1} parent=1 // loop_footer_branch
      %14 = sbr.rel target = $region3
    $region8: #{tpu_custom_call.1} parent=1 // loop_exit
      _
    %331 = vsyncpa [#allocation3], 1
    %s332 = scalar_lea.sflag [#allocation3], 1
    %333 = vsyncpa %s332, 1
    %334 = vsyncpa [#allocation6], 1
    %335 = vsyncpa [#allocation4], 1
    %s336 = scalar_lea.sflag [#allocation4], 1
    %337 = vsyncpa %s336, 1

</llo_original>
